<compile_context>
chip_gen: v6e
topology: v6e:2x2x1
jax: 0.10.0
libtpu: 0.0.40
codegen_flags: <defaults>
</compile_context>

<pallas_src>
import math
import jax
import jax.numpy as jnp
from jax.experimental import pallas as pl
from jax.experimental.pallas import tpu as pltpu

# ---------------------------- model dimensions -------------------------------
VOCAB = 64
SEQ = 8            # S
HIDDEN = 32        # H  (base_model.config.hidden_size)
FFN = 64           # intermediate size
NUM_CLASSES = 1    # nn.Linear(hidden_size, num_classes)
LN_EPS = 1e-5
BT_TARGET = 256    # batch tile (per-step working set ~100-200 KB << VMEM)

# packed [10, H] vector slab row indices
R_BQ, R_BK, R_BV, R_BO, R_B2, R_LN1G, R_LN1B, R_LN2G, R_LN2B, R_CLSW = range(10)


# ------------------------------- helpers --------------------------------------
def _gelu(x):
    # TODO(synk): HF BERT default is exact erf-GELU; tanh approximation kept
    # for guaranteed Mosaic lowering (difference is well below 1e-3).
    c = math.sqrt(2.0 / math.pi)
    return 0.5 * x * (1.0 + jnp.tanh(c * (x + 0.044715 * x * x * x)))


def _layernorm(x, gamma, beta):
    mu = jnp.mean(x, axis=-1, keepdims=True)
    xc = x - mu
    var = jnp.mean(xc * xc, axis=-1, keepdims=True)
    return xc * jax.lax.rsqrt(var + LN_EPS) * gamma + beta


# ---------------- Pallas kernel: embed + encoder + CLS classifier -------------
def encoder_cls_kernel(
    ids_ref,      # [BT, S]     int32 token ids
    mask_ref,     # [BT, S]     int32 attention mask
    tok_ref,      # [VOCAB, H]  bf16 token embedding
    pos_ref,      # [S, H]      f32  position embedding
    wq_ref,       # [H, H]      bf16
    wk_ref,       # [H, H]      bf16
    wv_ref,       # [H, H]      bf16
    wo_ref,       # [H, H]      bf16
    w1_ref,       # [H, FFN]    bf16
    b1_ref,       # [1, FFN]    f32
    w2_ref,       # [FFN, H]    bf16
    vecs_ref,     # [10, H]     f32  (bq,bk,bv,bo,b2,ln1_g,ln1_b,ln2_g,ln2_b,cls_w)
    clsb_ref,     # [1, 1]      f32  classifier bias
    out_ref,      # [BT, C]     f32  logits
):
    BT, S = ids_ref.shape
    H = tok_ref.shape[1]

    ids = ids_ref[...]
    vecs = vecs_ref[...]
    bq, bk, bv = vecs[R_BQ:R_BQ + 1, :], vecs[R_BK:R_BK + 1, :], vecs[R_BV:R_BV + 1, :]
    bo, b2 = vecs[R_BO:R_BO + 1, :], vecs[R_B2:R_B2 + 1, :]
    ln1_g, ln1_b = vecs[R_LN1G:R_LN1G + 1, :], vecs[R_LN1B:R_LN1B + 1, :]
    ln2_g, ln2_b = vecs[R_LN2G:R_LN2G + 1, :], vecs[R_LN2B:R_LN2B + 1, :]
    cls_w = vecs[R_CLSW:R_CLSW + 1, :]

    tok = tok_ref[...]        # bf16 [VOCAB, H]
    pos = pos_ref[...]        # f32  [S, H]

    # ---- fused embedding lookup: one-hot matmul (lowering-safe gather) ----
    iota_all = jax.lax.broadcasted_iota(jnp.int32, (BT, S, VOCAB), 2)
    oh_all = (ids[:, :, None] == iota_all).astype(jnp.bfloat16)           # [BT,S,V]
    xall = jnp.dot(oh_all.reshape(BT * S, VOCAB), tok,
                   preferred_element_type=jnp.float32)                    # [BT*S,H]
    x3 = xall.reshape(BT, S, H) + pos[None, :, :]                         # f32
    x2 = x3.reshape(BT * S, H)

    # CLS-row embedding built directly from ids[:,0] (no strided sublane gather)
    iota_cls = jax.lax.broadcasted_iota(jnp.int32, (BT, VOCAB), 1)
    oh_cls = (ids[:, 0:1] == iota_cls).astype(jnp.bfloat16)               # [BT,V]
    x_cls = jnp.dot(oh_cls, tok,
                    preferred_element_type=jnp.float32) + pos[0:1, :]     # [BT,H]

    # ---- K/V for all tokens; Q only for the CLS token ----
    x2_bf = x2.astype(jnp.bfloat16)
    k = jnp.dot(x2_bf, wk_ref[...], preferred_element_type=jnp.float32) + bk
    v = jnp.dot(x2_bf, wv_ref[...], preferred_element_type=jnp.float32) + bv
    q_cls = jnp.dot(x_cls.astype(jnp.bfloat16), wq_ref[...],
                    preferred_element_type=jnp.float32) + bq              # [BT,H]

    k3 = k.reshape(BT, S, H)
    v3 = v.reshape(BT, S, H)

    # ---- single-head attention (CLS query only), VPU mult + reductions ----
    scale = 1.0 / math.sqrt(H)
    scores = jnp.sum(q_cls[:, None, :] * k3, axis=-1) * scale             # [BT,S]
    scores = scores + jnp.where(mask_ref[...] > 0, 0.0, -1e9)
    m = jnp.max(scores, axis=-1, keepdims=True)
    p = jnp.exp(scores - m)
    attn = p * pl.reciprocal(jnp.sum(p, axis=-1, keepdims=True), approx=True)
    ctx = jnp.sum(attn[:, :, None] * v3, axis=1)                          # [BT,H]

    attn_out = jnp.dot(ctx.astype(jnp.bfloat16), wo_ref[...],
                       preferred_element_type=jnp.float32) + bo
    h1 = _layernorm(x_cls + attn_out, ln1_g, ln1_b)                       # [BT,H]

    # ---- feed forward (CLS rows only) ----
    f = jnp.dot(h1.astype(jnp.bfloat16), w1_ref[...],
                preferred_element_type=jnp.float32) + b1_ref[...]
    f = _gelu(f)
    f = jnp.dot(f.astype(jnp.bfloat16), w2_ref[...],
                preferred_element_type=jnp.float32) + b2
    h2 = _layernorm(h1 + f, ln2_g, ln2_b)                                 # [BT,H]

    # ---- Dropout(0.1) identity at inference; classifier on the VPU (C == 1) ----
    # TODO(synk): training-mode dropout would need pltpu.prng_seed + prng_random_bits.
    logits = jnp.sum(h2 * cls_w, axis=-1, keepdims=True) + clsb_ref[...]  # [BT,1]
    out_ref[...] = logits.astype(out_ref.dtype)


# ------------------------------- wrapper --------------------------------------
def online_learning_forward(params, input_ids, attention_mask):
    B, S = input_ids.shape
    C = NUM_CLASSES
    ids = input_ids.astype(jnp.int32)
    mask = attention_mask.astype(jnp.int32)

    # batch tiling: BT up to BT_TARGET; for B > 8 keep >= 2 grid steps so the
    # single "parallel" axis can be split across v7x's 2 TensorCores.
    if B <= 8:
        BT = B
    else:
        BT = min(BT_TARGET, pl.cdiv(pl.cdiv(B, 2), 8) * 8)
    Bp = pl.cdiv(B, BT) * BT
    pad = Bp - B
    if pad:
        ids = jnp.pad(ids, ((0, pad), (0, 0)))
        mask = jnp.pad(mask, ((0, pad), (0, 0)))

    def full(a):
        nd = a.ndim
        return pl.BlockSpec(a.shape, lambda b, _nd=nd: (0,) * _nd)

    logits = pl.pallas_call(
        encoder_cls_kernel,
        out_shape=jax.ShapeDtypeStruct((Bp, C), jnp.float32),
        grid=(Bp // BT,),
        in_specs=[
            pl.BlockSpec((BT, S), lambda b: (b, 0)),     # ids tile
            pl.BlockSpec((BT, S), lambda b: (b, 0)),     # mask tile
            full(params["tok_emb"]), full(params["pos_emb"]),
            full(params["wq"]), full(params["wk"]), full(params["wv"]),
            full(params["wo"]),
            full(params["w1"]), full(params["b1"]), full(params["w2"]),
            full(params["vecs"]), full(params["cls_b"]),
        ],
        out_specs=pl.BlockSpec((BT, C), lambda b: (b, 0)),
        compiler_params=pltpu.CompilerParams(
            dimension_semantics=("parallel",)),
    )(
        ids, mask,
        params["tok_emb"], params["pos_emb"],
        params["wq"], params["wk"], params["wv"], params["wo"],
        params["w1"], params["b1"], params["w2"],
        params["vecs"], params["cls_b"],
    )
    return logits[:B]                                    # [B, num_classes]


# --------------------------- deterministic params -----------------------------
def init_params(key):
    H, F = HIDDEN, FFN
    ks = jax.random.split(key, 9)
    n = lambda k, shape, s=0.02: jax.random.normal(k, shape, jnp.float32) * s

    vecs = jnp.zeros((10, H), jnp.float32)
    vecs = vecs.at[R_LN1G].set(1.0).at[R_LN2G].set(1.0)
    cls_w_row = jax.random.normal(ks[7], (H,), jnp.float32) / math.sqrt(H)
    vecs = vecs.at[R_CLSW].set(cls_w_row)

    return {
        "tok_emb": n(ks[0], (VOCAB, H)).astype(jnp.bfloat16),
        "pos_emb": n(ks[1], (SEQ, H)),                    # f32 (added post-matmul)
        "wq": n(ks[2], (H, H)).astype(jnp.bfloat16),
        "wk": n(ks[3], (H, H)).astype(jnp.bfloat16),
        "wv": n(ks[4], (H, H)).astype(jnp.bfloat16),
        "wo": n(ks[5], (H, H)).astype(jnp.bfloat16),
        "w1": n(ks[6], (H, F)).astype(jnp.bfloat16),
        "b1": jnp.zeros((1, F), jnp.float32),
        "w2": n(ks[8], (F, H)).astype(jnp.bfloat16),
        "vecs": vecs,                                     # packed H-width f32 vectors
        "cls_b": jnp.zeros((1, 1), jnp.float32),          # nn.Linear bias (C=1)
    }


if __name__ == "__main__":
    key = jax.random.PRNGKey(0)
    pkey, ikey = jax.random.split(key)

    params = init_params(pkey)

    B = 2
    input_ids = jax.random.randint(ikey, (B, SEQ), 0, VOCAB, dtype=jnp.int32)
    attention_mask = jnp.array(
        [[1, 1, 1, 1, 1, 1, 1, 1],
         [1, 1, 1, 1, 1, 0, 0, 0]], dtype=jnp.int32
    )

    logits = online_learning_forward(params, input_ids, attention_mask)
    jax.block_until_ready(logits)
    assert logits.shape == (B, NUM_CLASSES)
    print("KERNEL_OK")
</pallas_src>

<mosaic_0001>
module attributes {stable_mosaic.version = 11 : i64} {
  func.func @encoder_cls_kernel(%arg0: i32, %arg1: memref<2x8xi32, #tpu.memory_space<vmem>>, %arg2: memref<2x8xi32, #tpu.memory_space<vmem>>, %arg3: memref<64x32xbf16, #tpu.memory_space<vmem>>, %arg4: memref<8x32xf32, #tpu.memory_space<vmem>>, %arg5: memref<32x32xbf16, #tpu.memory_space<vmem>>, %arg6: memref<32x32xbf16, #tpu.memory_space<vmem>>, %arg7: memref<32x32xbf16, #tpu.memory_space<vmem>>, %arg8: memref<32x32xbf16, #tpu.memory_space<vmem>>, %arg9: memref<32x64xbf16, #tpu.memory_space<vmem>>, %arg10: memref<1x64xf32, #tpu.memory_space<vmem>>, %arg11: memref<64x32xbf16, #tpu.memory_space<vmem>>, %arg12: memref<10x32xf32, #tpu.memory_space<vmem>>, %arg13: memref<1x1xf32, #tpu.memory_space<vmem>>, %arg14: memref<2x1xf32, #tpu.memory_space<vmem>>) attributes {dimension_semantics = [#tpu.dimension_semantics<parallel>], iteration_bounds = array<i64: 1>, scalar_prefetch = 0 : i64, scratch_operands = 0 : i64, tpu.core_type = #tpu.core_type<tc>, window_params = [{transform_indices = @transform_0, window_bounds = array<i64: 2, 8>}, {transform_indices = @transform_1, window_bounds = array<i64: 2, 8>}, {pipeline_mode = #tpu.pipeline_mode<synchronous>, transform_indices = @transform_2, window_bounds = array<i64: 64, 32>}, {pipeline_mode = #tpu.pipeline_mode<synchronous>, transform_indices = @transform_3, window_bounds = array<i64: 8, 32>}, {pipeline_mode = #tpu.pipeline_mode<synchronous>, transform_indices = @transform_4, window_bounds = array<i64: 32, 32>}, {pipeline_mode = #tpu.pipeline_mode<synchronous>, transform_indices = @transform_5, window_bounds = array<i64: 32, 32>}, {pipeline_mode = #tpu.pipeline_mode<synchronous>, transform_indices = @transform_6, window_bounds = array<i64: 32, 32>}, {pipeline_mode = #tpu.pipeline_mode<synchronous>, transform_indices = @transform_7, window_bounds = array<i64: 32, 32>}, {pipeline_mode = #tpu.pipeline_mode<synchronous>, transform_indices = @transform_8, window_bounds = array<i64: 32, 64>}, {pipeline_mode = #tpu.pipeline_mode<synchronous>, transform_indices = @transform_9, window_bounds = array<i64: 1, 64>}, {pipeline_mode = #tpu.pipeline_mode<synchronous>, transform_indices = @transform_10, window_bounds = array<i64: 64, 32>}, {pipeline_mode = #tpu.pipeline_mode<synchronous>, transform_indices = @transform_11, window_bounds = array<i64: 10, 32>}, {pipeline_mode = #tpu.pipeline_mode<synchronous>, transform_indices = @transform_12, window_bounds = array<i64: 1, 1>}, {transform_indices = @transform_13, window_bounds = array<i64: 2, 1>}]} {
    %c0 = arith.constant 0 : index
    %c0_0 = arith.constant 0 : index
    %0 = vector.load %arg1[%c0, %c0_0] : memref<2x8xi32, #tpu.memory_space<vmem>>, vector<2x8xi32>
    %c0_1 = arith.constant 0 : index
    %c0_2 = arith.constant 0 : index
    %1 = vector.load %arg12[%c0_1, %c0_2] : memref<10x32xf32, #tpu.memory_space<vmem>>, vector<10x32xf32>
    %2 = vector.extract_strided_slice %1 {offsets = [0, 0], sizes = [1, 32], strides = [1, 1]} : vector<10x32xf32> to vector<1x32xf32>
    %3 = vector.extract_strided_slice %1 {offsets = [1, 0], sizes = [1, 32], strides = [1, 1]} : vector<10x32xf32> to vector<1x32xf32>
    %4 = vector.extract_strided_slice %1 {offsets = [2, 0], sizes = [1, 32], strides = [1, 1]} : vector<10x32xf32> to vector<1x32xf32>
    %5 = vector.extract_strided_slice %1 {offsets = [3, 0], sizes = [1, 32], strides = [1, 1]} : vector<10x32xf32> to vector<1x32xf32>
    %6 = vector.extract_strided_slice %1 {offsets = [4, 0], sizes = [1, 32], strides = [1, 1]} : vector<10x32xf32> to vector<1x32xf32>
    %7 = vector.extract_strided_slice %1 {offsets = [5, 0], sizes = [1, 32], strides = [1, 1]} : vector<10x32xf32> to vector<1x32xf32>
    %8 = vector.extract_strided_slice %1 {offsets = [6, 0], sizes = [1, 32], strides = [1, 1]} : vector<10x32xf32> to vector<1x32xf32>
    %9 = vector.extract_strided_slice %1 {offsets = [7, 0], sizes = [1, 32], strides = [1, 1]} : vector<10x32xf32> to vector<1x32xf32>
    %10 = vector.extract_strided_slice %1 {offsets = [8, 0], sizes = [1, 32], strides = [1, 1]} : vector<10x32xf32> to vector<1x32xf32>
    %11 = vector.extract_strided_slice %1 {offsets = [9, 0], sizes = [1, 32], strides = [1, 1]} : vector<10x32xf32> to vector<1x32xf32>
    %c0_3 = arith.constant 0 : index
    %c0_4 = arith.constant 0 : index
    %12 = vector.load %arg3[%c0_3, %c0_4] : memref<64x32xbf16, #tpu.memory_space<vmem>>, vector<64x32xbf16>
    %c0_5 = arith.constant 0 : index
    %c0_6 = arith.constant 0 : index
    %13 = vector.load %arg4[%c0_5, %c0_6] : memref<8x32xf32, #tpu.memory_space<vmem>>, vector<8x32xf32>
    %14 = tpu.iota {dimensions = array<i32: 2>} : vector<2x8x64xi32>
    %15 = vector.shape_cast %0 : vector<2x8xi32> to vector<2x8x1xi32>
    %16 = vector.broadcast %15 : vector<2x8x1xi32> to vector<2x8x64xi32>
    %17 = arith.cmpi eq, %16, %14 : vector<2x8x64xi32>
    %18 = arith.extui %17 : vector<2x8x64xi1> to vector<2x8x64xi32>
    %19 = arith.sitofp %18 : vector<2x8x64xi32> to vector<2x8x64xf32>
    %20 = arith.truncf %19 : vector<2x8x64xf32> to vector<2x8x64xbf16>
    %21 = vector.shape_cast %20 : vector<2x8x64xbf16> to vector<16x64xbf16>
    %cst = arith.constant dense<0.000000e+00> : vector<16x32xf32>
    %22 = tpu.matmul %21, %12, %cst {dimension_numbers = #tpu.dot_dimension_numbers<[1], [0], [0], [1], [0, 0, 1, 1], [], []>} : vector<16x64xbf16>, vector<64x32xbf16>, vector<16x32xf32> -> vector<16x32xf32>
    %23 = vector.shape_cast %22 : vector<16x32xf32> to vector<2x8x32xf32>
    %24 = vector.shape_cast %13 : vector<8x32xf32> to vector<1x8x32xf32>
    %25 = vector.broadcast %24 : vector<1x8x32xf32> to vector<2x8x32xf32>
    %26 = arith.addf %23, %25 : vector<2x8x32xf32>
    %27 = vector.shape_cast %26 : vector<2x8x32xf32> to vector<16x32xf32>
    %28 = tpu.iota {dimensions = array<i32: 1>} : vector<2x64xi32>
    %29 = vector.extract_strided_slice %0 {offsets = [0, 0], sizes = [2, 1], strides = [1, 1]} : vector<2x8xi32> to vector<2x1xi32>
    %30 = vector.broadcast %29 : vector<2x1xi32> to vector<2x64xi32>
    %31 = arith.cmpi eq, %30, %28 : vector<2x64xi32>
    %32 = arith.extui %31 : vector<2x64xi1> to vector<2x64xi32>
    %33 = arith.sitofp %32 : vector<2x64xi32> to vector<2x64xf32>
    %34 = arith.truncf %33 : vector<2x64xf32> to vector<2x64xbf16>
    %cst_7 = arith.constant dense<0.000000e+00> : vector<2x32xf32>
    %35 = tpu.matmul %34, %12, %cst_7 {dimension_numbers = #tpu.dot_dimension_numbers<[1], [0], [0], [1], [0, 0, 1, 1], [], []>} : vector<2x64xbf16>, vector<64x32xbf16>, vector<2x32xf32> -> vector<2x32xf32>
    %36 = vector.extract_strided_slice %13 {offsets = [0, 0], sizes = [1, 32], strides = [1, 1]} : vector<8x32xf32> to vector<1x32xf32>
    %37 = vector.broadcast %36 : vector<1x32xf32> to vector<2x32xf32>
    %38 = arith.addf %35, %37 : vector<2x32xf32>
    %39 = arith.truncf %27 : vector<16x32xf32> to vector<16x32xbf16>
    %c0_8 = arith.constant 0 : index
    %c0_9 = arith.constant 0 : index
    %40 = vector.load %arg6[%c0_8, %c0_9] : memref<32x32xbf16, #tpu.memory_space<vmem>>, vector<32x32xbf16>
    %cst_10 = arith.constant dense<0.000000e+00> : vector<16x32xf32>
    %41 = tpu.matmul %39, %40, %cst_10 {dimension_numbers = #tpu.dot_dimension_numbers<[1], [0], [0], [1], [0, 0, 1, 1], [], []>} : vector<16x32xbf16>, vector<32x32xbf16>, vector<16x32xf32> -> vector<16x32xf32>
    %42 = vector.broadcast %3 : vector<1x32xf32> to vector<16x32xf32>
    %43 = arith.addf %41, %42 : vector<16x32xf32>
    %c0_11 = arith.constant 0 : index
    %c0_12 = arith.constant 0 : index
    %44 = vector.load %arg7[%c0_11, %c0_12] : memref<32x32xbf16, #tpu.memory_space<vmem>>, vector<32x32xbf16>
    %cst_13 = arith.constant dense<0.000000e+00> : vector<16x32xf32>
    %45 = tpu.matmul %39, %44, %cst_13 {dimension_numbers = #tpu.dot_dimension_numbers<[1], [0], [0], [1], [0, 0, 1, 1], [], []>} : vector<16x32xbf16>, vector<32x32xbf16>, vector<16x32xf32> -> vector<16x32xf32>
    %46 = vector.broadcast %4 : vector<1x32xf32> to vector<16x32xf32>
    %47 = arith.addf %45, %46 : vector<16x32xf32>
    %48 = arith.truncf %38 : vector<2x32xf32> to vector<2x32xbf16>
    %c0_14 = arith.constant 0 : index
    %c0_15 = arith.constant 0 : index
    %49 = vector.load %arg5[%c0_14, %c0_15] : memref<32x32xbf16, #tpu.memory_space<vmem>>, vector<32x32xbf16>
    %cst_16 = arith.constant dense<0.000000e+00> : vector<2x32xf32>
    %50 = tpu.matmul %48, %49, %cst_16 {dimension_numbers = #tpu.dot_dimension_numbers<[1], [0], [0], [1], [0, 0, 1, 1], [], []>} : vector<2x32xbf16>, vector<32x32xbf16>, vector<2x32xf32> -> vector<2x32xf32>
    %51 = vector.broadcast %2 : vector<1x32xf32> to vector<2x32xf32>
    %52 = arith.addf %50, %51 : vector<2x32xf32>
    %53 = vector.shape_cast %43 : vector<16x32xf32> to vector<2x8x32xf32>
    %54 = vector.shape_cast %47 : vector<16x32xf32> to vector<2x8x32xf32>
    %55 = vector.shape_cast %52 : vector<2x32xf32> to vector<2x1x32xf32>
    %56 = vector.broadcast %55 : vector<2x1x32xf32> to vector<2x8x32xf32>
    %57 = arith.mulf %56, %53 : vector<2x8x32xf32>
    %cst_17 = arith.constant dense<0.000000e+00> : vector<2x8xf32>
    %58 = vector.multi_reduction <add>, %57, %cst_17 [2] : vector<2x8x32xf32> to vector<2x8xf32>
    %cst_18 = arith.constant 0.176776692 : f32
    %59 = vector.broadcast %cst_18 : f32 to vector<2x8xf32>
    %60 = arith.mulf %58, %59 : vector<2x8xf32>
    %c0_19 = arith.constant 0 : index
    %c0_20 = arith.constant 0 : index
    %61 = vector.load %arg2[%c0_19, %c0_20] : memref<2x8xi32, #tpu.memory_space<vmem>>, vector<2x8xi32>
    %c0_i32 = arith.constant 0 : i32
    %62 = vector.broadcast %c0_i32 : i32 to vector<2x8xi32>
    %63 = arith.cmpi sgt, %61, %62 : vector<2x8xi32>
    %cst_21 = arith.constant 0.000000e+00 : f32
    %cst_22 = arith.constant -1.000000e+09 : f32
    %64 = vector.broadcast %cst_21 : f32 to vector<2x8xf32>
    %65 = vector.broadcast %cst_22 : f32 to vector<2x8xf32>
    %66 = arith.select %63, %64, %65 : vector<2x8xi1>, vector<2x8xf32>
    %67 = arith.addf %60, %66 : vector<2x8xf32>
    %cst_23 = arith.constant dense<0xFF800000> : vector<2xf32>
    %68 = vector.multi_reduction <maximumf>, %67, %cst_23 [1] : vector<2x8xf32> to vector<2xf32>
    %69 = vector.shape_cast %68 : vector<2xf32> to vector<2x1xf32>
    %70 = vector.broadcast %69 : vector<2x1xf32> to vector<2x8xf32>
    %71 = arith.subf %67, %70 : vector<2x8xf32>
    %72 = math.exp %71 : vector<2x8xf32>
    %cst_24 = arith.constant dense<0.000000e+00> : vector<2xf32>
    %73 = vector.multi_reduction <add>, %72, %cst_24 [1] : vector<2x8xf32> to vector<2xf32>
    %74 = vector.shape_cast %73 : vector<2xf32> to vector<2x1xf32>
    %75 = tpu.reciprocal %74 {approx = true} : vector<2x1xf32> -> vector<2x1xf32>
    %76 = vector.broadcast %75 : vector<2x1xf32> to vector<2x8xf32>
    %77 = arith.mulf %72, %76 : vector<2x8xf32>
    %78 = vector.shape_cast %77 : vector<2x8xf32> to vector<2x8x1xf32>
    %79 = vector.broadcast %78 : vector<2x8x1xf32> to vector<2x8x32xf32>
    %80 = arith.mulf %79, %54 : vector<2x8x32xf32>
    %cst_25 = arith.constant dense<0.000000e+00> : vector<2x32xf32>
    %81 = vector.multi_reduction <add>, %80, %cst_25 [1] : vector<2x8x32xf32> to vector<2x32xf32>
    %82 = arith.truncf %81 : vector<2x32xf32> to vector<2x32xbf16>
    %c0_26 = arith.constant 0 : index
    %c0_27 = arith.constant 0 : index
    %83 = vector.load %arg8[%c0_26, %c0_27] : memref<32x32xbf16, #tpu.memory_space<vmem>>, vector<32x32xbf16>
    %cst_28 = arith.constant dense<0.000000e+00> : vector<2x32xf32>
    %84 = tpu.matmul %82, %83, %cst_28 {dimension_numbers = #tpu.dot_dimension_numbers<[1], [0], [0], [1], [0, 0, 1, 1], [], []>} : vector<2x32xbf16>, vector<32x32xbf16>, vector<2x32xf32> -> vector<2x32xf32>
    %85 = vector.broadcast %5 : vector<1x32xf32> to vector<2x32xf32>
    %86 = arith.addf %84, %85 : vector<2x32xf32>
    %87 = arith.addf %38, %86 : vector<2x32xf32>
    %cst_29 = arith.constant dense<0.000000e+00> : vector<2xf32>
    %88 = vector.multi_reduction <add>, %87, %cst_29 [1] : vector<2x32xf32> to vector<2xf32>
    %89 = vector.shape_cast %88 : vector<2xf32> to vector<2x1xf32>
    %cst_30 = arith.constant 3.200000e+01 : f32
    %90 = vector.broadcast %cst_30 : f32 to vector<2x1xf32>
    %91 = arith.divf %89, %90 : vector<2x1xf32>
    %92 = vector.broadcast %91 : vector<2x1xf32> to vector<2x32xf32>
    %93 = arith.subf %87, %92 : vector<2x32xf32>
    %94 = arith.mulf %93, %93 : vector<2x32xf32>
    %cst_31 = arith.constant dense<0.000000e+00> : vector<2xf32>
    %95 = vector.multi_reduction <add>, %94, %cst_31 [1] : vector<2x32xf32> to vector<2xf32>
    %96 = vector.shape_cast %95 : vector<2xf32> to vector<2x1xf32>
    %cst_32 = arith.constant 3.200000e+01 : f32
    %97 = vector.broadcast %cst_32 : f32 to vector<2x1xf32>
    %98 = arith.divf %96, %97 : vector<2x1xf32>
    %cst_33 = arith.constant 9.99999974E-6 : f32
    %99 = vector.broadcast %cst_33 : f32 to vector<2x1xf32>
    %100 = arith.addf %98, %99 : vector<2x1xf32>
    %101 = math.rsqrt %100 : vector<2x1xf32>
    %102 = vector.broadcast %101 : vector<2x1xf32> to vector<2x32xf32>
    %103 = arith.mulf %93, %102 : vector<2x32xf32>
    %104 = vector.broadcast %7 : vector<1x32xf32> to vector<2x32xf32>
    %105 = arith.mulf %103, %104 : vector<2x32xf32>
    %106 = vector.broadcast %8 : vector<1x32xf32> to vector<2x32xf32>
    %107 = arith.addf %105, %106 : vector<2x32xf32>
    %108 = arith.truncf %107 : vector<2x32xf32> to vector<2x32xbf16>
    %c0_34 = arith.constant 0 : index
    %c0_35 = arith.constant 0 : index
    %109 = vector.load %arg9[%c0_34, %c0_35] : memref<32x64xbf16, #tpu.memory_space<vmem>>, vector<32x64xbf16>
    %cst_36 = arith.constant dense<0.000000e+00> : vector<2x64xf32>
    %110 = tpu.matmul %108, %109, %cst_36 {dimension_numbers = #tpu.dot_dimension_numbers<[1], [0], [0], [1], [0, 0, 1, 1], [], []>} : vector<2x32xbf16>, vector<32x64xbf16>, vector<2x64xf32> -> vector<2x64xf32>
    %c0_37 = arith.constant 0 : index
    %c0_38 = arith.constant 0 : index
    %111 = vector.load %arg10[%c0_37, %c0_38] : memref<1x64xf32, #tpu.memory_space<vmem>>, vector<1x64xf32>
    %112 = vector.broadcast %111 : vector<1x64xf32> to vector<2x64xf32>
    %113 = arith.addf %110, %112 : vector<2x64xf32>
    %cst_39 = arith.constant 5.000000e-01 : f32
    %114 = vector.broadcast %cst_39 : f32 to vector<2x64xf32>
    %115 = arith.mulf %114, %113 : vector<2x64xf32>
    %cst_40 = arith.constant 4.471500e-02 : f32
    %116 = vector.broadcast %cst_40 : f32 to vector<2x64xf32>
    %117 = arith.mulf %116, %113 : vector<2x64xf32>
    %118 = arith.mulf %117, %113 : vector<2x64xf32>
    %119 = arith.mulf %118, %113 : vector<2x64xf32>
    %120 = arith.addf %113, %119 : vector<2x64xf32>
    %cst_41 = arith.constant 0.797884583 : f32
    %121 = vector.broadcast %cst_41 : f32 to vector<2x64xf32>
    %122 = arith.mulf %121, %120 : vector<2x64xf32>
    %123 = math.tanh %122 : vector<2x64xf32>
    %cst_42 = arith.constant 1.000000e+00 : f32
    %124 = vector.broadcast %cst_42 : f32 to vector<2x64xf32>
    %125 = arith.addf %124, %123 : vector<2x64xf32>
    %126 = arith.mulf %115, %125 : vector<2x64xf32>
    %127 = arith.truncf %126 : vector<2x64xf32> to vector<2x64xbf16>
    %c0_43 = arith.constant 0 : index
    %c0_44 = arith.constant 0 : index
    %128 = vector.load %arg11[%c0_43, %c0_44] : memref<64x32xbf16, #tpu.memory_space<vmem>>, vector<64x32xbf16>
    %cst_45 = arith.constant dense<0.000000e+00> : vector<2x32xf32>
    %129 = tpu.matmul %127, %128, %cst_45 {dimension_numbers = #tpu.dot_dimension_numbers<[1], [0], [0], [1], [0, 0, 1, 1], [], []>} : vector<2x64xbf16>, vector<64x32xbf16>, vector<2x32xf32> -> vector<2x32xf32>
    %130 = vector.broadcast %6 : vector<1x32xf32> to vector<2x32xf32>
    %131 = arith.addf %129, %130 : vector<2x32xf32>
    %132 = arith.addf %107, %131 : vector<2x32xf32>
    %cst_46 = arith.constant dense<0.000000e+00> : vector<2xf32>
    %133 = vector.multi_reduction <add>, %132, %cst_46 [1] : vector<2x32xf32> to vector<2xf32>
    %134 = vector.shape_cast %133 : vector<2xf32> to vector<2x1xf32>
    %cst_47 = arith.constant 3.200000e+01 : f32
    %135 = vector.broadcast %cst_47 : f32 to vector<2x1xf32>
    %136 = arith.divf %134, %135 : vector<2x1xf32>
    %137 = vector.broadcast %136 : vector<2x1xf32> to vector<2x32xf32>
    %138 = arith.subf %132, %137 : vector<2x32xf32>
    %139 = arith.mulf %138, %138 : vector<2x32xf32>
    %cst_48 = arith.constant dense<0.000000e+00> : vector<2xf32>
    %140 = vector.multi_reduction <add>, %139, %cst_48 [1] : vector<2x32xf32> to vector<2xf32>
    %141 = vector.shape_cast %140 : vector<2xf32> to vector<2x1xf32>
    %cst_49 = arith.constant 3.200000e+01 : f32
    %142 = vector.broadcast %cst_49 : f32 to vector<2x1xf32>
    %143 = arith.divf %141, %142 : vector<2x1xf32>
    %cst_50 = arith.constant 9.99999974E-6 : f32
    %144 = vector.broadcast %cst_50 : f32 to vector<2x1xf32>
    %145 = arith.addf %143, %144 : vector<2x1xf32>
    %146 = math.rsqrt %145 : vector<2x1xf32>
    %147 = vector.broadcast %146 : vector<2x1xf32> to vector<2x32xf32>
    %148 = arith.mulf %138, %147 : vector<2x32xf32>
    %149 = vector.broadcast %9 : vector<1x32xf32> to vector<2x32xf32>
    %150 = arith.mulf %148, %149 : vector<2x32xf32>
    %151 = vector.broadcast %10 : vector<1x32xf32> to vector<2x32xf32>
    %152 = arith.addf %150, %151 : vector<2x32xf32>
    %153 = vector.broadcast %11 : vector<1x32xf32> to vector<2x32xf32>
    %154 = arith.mulf %152, %153 : vector<2x32xf32>
    %cst_51 = arith.constant dense<0.000000e+00> : vector<2xf32>
    %155 = vector.multi_reduction <add>, %154, %cst_51 [1] : vector<2x32xf32> to vector<2xf32>
    %156 = vector.shape_cast %155 : vector<2xf32> to vector<2x1xf32>
    %c0_52 = arith.constant 0 : index
    %c0_53 = arith.constant 0 : index
    %157 = vector.load %arg13[%c0_52, %c0_53] : memref<1x1xf32, #tpu.memory_space<vmem>>, vector<1x1xf32>
    %158 = vector.broadcast %157 : vector<1x1xf32> to vector<2x1xf32>
    %159 = arith.addf %156, %158 : vector<2x1xf32>
    %c0_54 = arith.constant 0 : index
    %c0_55 = arith.constant 0 : index
    %160 = vector.load %arg14[%c0_54, %c0_55] : memref<2x1xf32, #tpu.memory_space<vmem>>, vector<2x1xf32>
    tpu.vector_store %arg14[%c0_54, %c0_55], %159 {strides = array<i32>} : memref<2x1xf32, #tpu.memory_space<vmem>>, vector<2x1xf32>,
    return
  }
  func.func @transform_0(%arg0: i32) -> (i32, i32) {
    %c0_i32 = arith.constant 0 : i32
    %c0_i32_0 = arith.constant 0 : i32
    return %arg0, %c0_i32 : i32, i32
  }
  func.func @transform_1(%arg0: i32) -> (i32, i32) {
    %c0_i32 = arith.constant 0 : i32
    %c0_i32_0 = arith.constant 0 : i32
    return %arg0, %c0_i32 : i32, i32
  }
  func.func @transform_2(%arg0: i32) -> (i32, i32) {
    %c0_i32 = arith.constant 0 : i32
    %c0_i32_0 = arith.constant 0 : i32
    %c0_i32_1 = arith.constant 0 : i32
    return %c0_i32, %c0_i32_0 : i32, i32
  }
  func.func @transform_3(%arg0: i32) -> (i32, i32) {
    %c0_i32 = arith.constant 0 : i32
    %c0_i32_0 = arith.constant 0 : i32
    %c0_i32_1 = arith.constant 0 : i32
    return %c0_i32, %c0_i32_0 : i32, i32
  }
  func.func @transform_4(%arg0: i32) -> (i32, i32) {
    %c0_i32 = arith.constant 0 : i32
    %c0_i32_0 = arith.constant 0 : i32
    %c0_i32_1 = arith.constant 0 : i32
    return %c0_i32, %c0_i32_0 : i32, i32
  }
  func.func @transform_5(%arg0: i32) -> (i32, i32) {
    %c0_i32 = arith.constant 0 : i32
    %c0_i32_0 = arith.constant 0 : i32
    %c0_i32_1 = arith.constant 0 : i32
    return %c0_i32, %c0_i32_0 : i32, i32
  }
  func.func @transform_6(%arg0: i32) -> (i32, i32) {
    %c0_i32 = arith.constant 0 : i32
    %c0_i32_0 = arith.constant 0 : i32
    %c0_i32_1 = arith.constant 0 : i32
    return %c0_i32, %c0_i32_0 : i32, i32
  }
  func.func @transform_7(%arg0: i32) -> (i32, i32) {
    %c0_i32 = arith.constant 0 : i32
    %c0_i32_0 = arith.constant 0 : i32
    %c0_i32_1 = arith.constant 0 : i32
    return %c0_i32, %c0_i32_0 : i32, i32
  }
  func.func @transform_8(%arg0: i32) -> (i32, i32) {
    %c0_i32 = arith.constant 0 : i32
    %c0_i32_0 = arith.constant 0 : i32
    %c0_i32_1 = arith.constant 0 : i32
    return %c0_i32, %c0_i32_0 : i32, i32
  }
  func.func @transform_9(%arg0: i32) -> (i32, i32) {
    %c0_i32 = arith.constant 0 : i32
    %c0_i32_0 = arith.constant 0 : i32
    %c0_i32_1 = arith.constant 0 : i32
    return %c0_i32, %c0_i32_0 : i32, i32
  }
  func.func @transform_10(%arg0: i32) -> (i32, i32) {
    %c0_i32 = arith.constant 0 : i32
    %c0_i32_0 = arith.constant 0 : i32
    %c0_i32_1 = arith.constant 0 : i32
    return %c0_i32, %c0_i32_0 : i32, i32
  }
  func.func @transform_11(%arg0: i32) -> (i32, i32) {
    %c0_i32 = arith.constant 0 : i32
    %c0_i32_0 = arith.constant 0 : i32
    %c0_i32_1 = arith.constant 0 : i32
    return %c0_i32, %c0_i32_0 : i32, i32
  }
  func.func @transform_12(%arg0: i32) -> (i32, i32) {
    %c0_i32 = arith.constant 0 : i32
    %c0_i32_0 = arith.constant 0 : i32
    %c0_i32_1 = arith.constant 0 : i32
    return %c0_i32, %c0_i32_0 : i32, i32
  }
  func.func @transform_13(%arg0: i32) -> (i32, i32) {
    %c0_i32 = arith.constant 0 : i32
    %c0_i32_0 = arith.constant 0 : i32
    return %arg0, %c0_i32 : i32, i32
  }
}

</mosaic_0001>

<llo_original>
// kernel: tpu_custom_call.1
$region0: #{tpu_custom_call.1}
  #allocation0 [shape = 'u32[]', space=smem, size = 0x4, offset = 0x4, fixed_abs, tag = 'smem constant byte address 0x4 - core index']
  #allocation1 [shape = 'u32[144,128]{1,0:T(1,128)}', space=vmem, size = 0x12000, scoped, tag = 'internal scratch']
  #allocation2 [shape = 'f32[1,1]{1,0:T(1,128)S(1)}', space=vmem, size = 0x200, scoped, tag = 'scoped memory for tpu_custom_call.1']
  %s0 = inlined_call_operand.hbm [shape: s32[2,8], index: 0, kind: input, shape index: {}]
  %s1 = inlined_call_operand.hbm [shape: s32[2,8], index: 1, kind: input, shape index: {}]
  %s2 = inlined_call_operand.vmem [shape: bf16[64,32], index: 2, kind: input, shape index: {}]
  %s3 = inlined_call_operand.hbm [shape: f32[8,32], index: 3, kind: input, shape index: {}]
  %s4 = inlined_call_operand.vmem [shape: bf16[32,32], index: 4, kind: input, shape index: {}]
  %s5 = inlined_call_operand.vmem [shape: bf16[32,32], index: 5, kind: input, shape index: {}]
  %s6 = inlined_call_operand.vmem [shape: bf16[32,32], index: 6, kind: input, shape index: {}]
  %s7 = inlined_call_operand.vmem [shape: bf16[32,32], index: 7, kind: input, shape index: {}]
  %s8 = inlined_call_operand.vmem [shape: bf16[32,64], index: 8, kind: input, shape index: {}]
  %s9 = inlined_call_operand.vmem [shape: f32[1,64], index: 9, kind: input, shape index: {}]
  %s10 = inlined_call_operand.vmem [shape: bf16[64,32], index: 10, kind: input, shape index: {}]
  %s11 = inlined_call_operand.vmem [shape: f32[10,32], index: 11, kind: input, shape index: {}]
  %s12 = inlined_call_operand.<no memory space> [shape: f32[1,1], index: 12, kind: input, shape index: {}]
  %s13 = inlined_call_operand.vmem [shape: f32[2,1], index: 13, kind: output, shape index: {}]
  %s14 = sld [smem:[#allocation0]]
  $region74: #{tpu_custom_call.1} parent=0
    _
  %s16 = ssub.s32 1, %s14
  %s17 = scalar_select 0, %s16, %s14
  %v18 = vstv %s12
  %19 = vst [vmem:[#allocation2] sm:$0x1] %v18
  $region1: #{tpu_custom_call.1} parent=0
    #allocation3 [shape = 'u8[1024]{0}', space=vmem, size = 0x400, scoped, tag = 'input window, operand 0, single buffered']
    #allocation4 [shape = 's32[1]{0}', space=sflag, size = 0x4, scoped, tag = 'scoped memory for tpu_custom_call.1']
    #allocation5 [shape = 'u8[1024]{0}', space=vmem, size = 0x400, scoped, tag = 'input window, operand 1, single buffered']
    #allocation6 [shape = 's32[1]{0}', space=sflag, size = 0x4, scoped, tag = 'scoped memory for tpu_custom_call.1']
    #allocation7 [shape = 'u8[4096]{0}', space=vmem, size = 0x1000, scoped, tag = 'input window, operand 3, single buffered']
    %20 = vsyncpa [#allocation4], 0
    %21 = vsyncpa [#allocation6], 0
    // Predicated region
    $region2: #{tpu_custom_call.1} parent=1 // pred_check
      _
    $region3: #{tpu_custom_call.1} parent=1 // pred_check_branch
      %23 = sbr.rel (0) target = $region5
    $region4: #{tpu_custom_call.1} parent=1 // pred_region
      %s25 = ssub.s32 32, 32
      %26 = vsyncadd [#allocation4], %s25
      %s28 = sshll.u32 [#allocation3], 4
      %s29 = int_to_ptr.vmem [resolvable:$true] %s28
      %31 = dma.hbm_to_vmem [thread:$0]  %s0, 32, %s29, [#allocation4]
    $region5: #{tpu_custom_call.1} parent=1 // pred_fallthru
      _
    // Predicated region
    $region6: #{tpu_custom_call.1} parent=1 // pred_check
      _
    $region7: #{tpu_custom_call.1} parent=1 // pred_check_branch
      %33 = sbr.rel (0) target = $region9
    $region8: #{tpu_custom_call.1} parent=1 // pred_region
      %s35 = ssub.s32 32, 32
      %36 = vsyncadd [#allocation6], %s35
      %s38 = sshll.u32 [#allocation5], 4
      %s39 = int_to_ptr.vmem [resolvable:$true] %s38
      %41 = dma.hbm_to_vmem [thread:$0]  %s1, 32, %s39, [#allocation6]
    $region9: #{tpu_custom_call.1} parent=1 // pred_fallthru
      _
    // Predicated region
    $region10: #{tpu_custom_call.1} parent=1 // pred_check
      _
    $region11: #{tpu_custom_call.1} parent=1 // pred_check_branch
      %43 = sbr.rel (0) target = $region13
    $region12: #{tpu_custom_call.1} parent=1 // pred_region
      _
    $region13: #{tpu_custom_call.1} parent=1 // pred_fallthru
      _
    // Predicated region
    $region14: #{tpu_custom_call.1} parent=1 // pred_check
      _
    $region15: #{tpu_custom_call.1} parent=1 // pred_check_branch
      %45 = sbr.rel (0) target = $region17
    $region16: #{tpu_custom_call.1} parent=1 // pred_region
      %s47 = ssub.s32 128, 128
      %48 = vsyncadd [#allocation6], %s47
      %s50 = sshll.u32 [#allocation7], 4
      %s51 = int_to_ptr.vmem [resolvable:$true] %s50
      %53 = dma.hbm_to_vmem [thread:$0]  %s3, 128, %s51, [#allocation6]
    $region17: #{tpu_custom_call.1} parent=1 // pred_fallthru
      _
    // Predicated region
    $region18: #{tpu_custom_call.1} parent=1 // pred_check
      _
    $region19: #{tpu_custom_call.1} parent=1 // pred_check_branch
      %55 = sbr.rel (0) target = $region21
    $region20: #{tpu_custom_call.1} parent=1 // pred_region
      _
    $region21: #{tpu_custom_call.1} parent=1 // pred_fallthru
      _
    // Predicated region
    $region22: #{tpu_custom_call.1} parent=1 // pred_check
      _
    $region23: #{tpu_custom_call.1} parent=1 // pred_check_branch
      %57 = sbr.rel (0) target = $region25
    $region24: #{tpu_custom_call.1} parent=1 // pred_region
      _
    $region25: #{tpu_custom_call.1} parent=1 // pred_fallthru
      _
    // Predicated region
    $region26: #{tpu_custom_call.1} parent=1 // pred_check
      _
    $region27: #{tpu_custom_call.1} parent=1 // pred_check_branch
      %59 = sbr.rel (0) target = $region29
    $region28: #{tpu_custom_call.1} parent=1 // pred_region
      _
    $region29: #{tpu_custom_call.1} parent=1 // pred_fallthru
      _
    // Predicated region
    $region30: #{tpu_custom_call.1} parent=1 // pred_check
      _
    $region31: #{tpu_custom_call.1} parent=1 // pred_check_branch
      %61 = sbr.rel (0) target = $region33
    $region32: #{tpu_custom_call.1} parent=1 // pred_region
      _
    $region33: #{tpu_custom_call.1} parent=1 // pred_fallthru
      _
    // Predicated region
    $region34: #{tpu_custom_call.1} parent=1 // pred_check
      _
    $region35: #{tpu_custom_call.1} parent=1 // pred_check_branch
      %63 = sbr.rel (0) target = $region37
    $region36: #{tpu_custom_call.1} parent=1 // pred_region
      _
    $region37: #{tpu_custom_call.1} parent=1 // pred_fallthru
      _
    // Predicated region
    $region38: #{tpu_custom_call.1} parent=1 // pred_check
      _
    $region39: #{tpu_custom_call.1} parent=1 // pred_check_branch
      %65 = sbr.rel (0) target = $region41
    $region40: #{tpu_custom_call.1} parent=1 // pred_region
      _
    $region41: #{tpu_custom_call.1} parent=1 // pred_fallthru
      _
    // Predicated region
    $region42: #{tpu_custom_call.1} parent=1 // pred_check
      _
    $region43: #{tpu_custom_call.1} parent=1 // pred_check_branch
      %67 = sbr.rel (0) target = $region45
    $region44: #{tpu_custom_call.1} parent=1 // pred_region
      _
    $region45: #{tpu_custom_call.1} parent=1 // pred_fallthru
      _
    // Predicated region
    $region46: #{tpu_custom_call.1} parent=1 // pred_check
      _
    $region47: #{tpu_custom_call.1} parent=1 // pred_check_branch
      %69 = sbr.rel (0) target = $region49
    $region48: #{tpu_custom_call.1} parent=1 // pred_region
      _
    $region49: #{tpu_custom_call.1} parent=1 // pred_fallthru
      _
    // Predicated region
    $region50: #{tpu_custom_call.1} parent=1 // pred_check
      _
    $region51: #{tpu_custom_call.1} parent=1 // pred_check_branch
      %71 = sbr.rel (0) target = $region53
    $region52: #{tpu_custom_call.1} parent=1 // pred_region
      _
    $region53: #{tpu_custom_call.1} parent=1 // pred_fallthru
      _
    // Predicated region
    $region54: #{tpu_custom_call.1} parent=1 // pred_check
      _
    $region55: #{tpu_custom_call.1} parent=1 // pred_check_branch
      %73 = sbr.rel (0) target = $region57
    $region56: #{tpu_custom_call.1} parent=1 // pred_region
      %74 = dma.done [#allocation4], 32
    $region57: #{tpu_custom_call.1} parent=1 // pred_fallthru
      _
    // Predicated region
    $region58: #{tpu_custom_call.1} parent=1 // pred_check
      _
    $region59: #{tpu_custom_call.1} parent=1 // pred_check_branch
      %76 = sbr.rel (0) target = $region61
    $region60: #{tpu_custom_call.1} parent=1 // pred_region
      %77 = dma.done [#allocation6], 32
    $region61: #{tpu_custom_call.1} parent=1 // pred_fallthru
      _
    // Predicated region
    $region62: #{tpu_custom_call.1} parent=1 // pred_check
      _
    $region63: #{tpu_custom_call.1} parent=1 // pred_check_branch
      %79 = sbr.rel (0) target = $region65
    $region64: #{tpu_custom_call.1} parent=1 // pred_region
      %80 = dma.done [#allocation6], 128
    $region65: #{tpu_custom_call.1} parent=1 // pred_fallthru
      _
    %v82 = vld [vmem:[#allocation3] sm:$0x3]
    %v83 = vld [vmem:[%s11] sm:$0xff]
    %v84 = vld [vmem:[%s11 + $0x8] sm:$0x3]
    %v85 = vld [vmem:[%s2] sm:$0xf]
    %v86 = vld [vmem:[%s2 + $0x4] sm:$0xf]
    %v87 = vld [vmem:[%s2 + $0x8] sm:$0xf]
    %v88 = vld [vmem:[%s2 + $0xc] sm:$0xf]
    %v89 = vld [vmem:[%s2 + $0x10] sm:$0xf]
    %v90 = vld [vmem:[%s2 + $0x14] sm:$0xf]
    %v91 = vld [vmem:[%s2 + $0x18] sm:$0xf]
    %v92 = vld [vmem:[%s2 + $0x1c] sm:$0xf]
    %v93 = vld [vmem:[#allocation7] sm:$0xff]
    %v94 = vlaneseq
    %v95 = vand.u32 %v94, 127
    %v96 = vlaneseq
    %v97 = vshrl.u32 %v96, 7
    %v98 = vsub.s32 0, %v97
    %v99 = vrot.slane %v82, %v98
    %101 = vbcast.lane.b32.xlu0 %v99, 256
    %v102 = vpop.permute.xlu0 %101
    %v103 = vlaneseq
    %v104 = vshrl.u32 %v103, 7
    %v105 = vsub.s32 1, %v104
    %v106 = vrot.slane %v82, %v105
    %108 = vbcast.lane.b32.xlu0 %v106, 256
    %v109 = vpop.permute.xlu0 %108
    %vm110 = vcmp.eq.s32.totalorder %v102, %v95
    %vm111 = vcmp.eq.s32.totalorder %v109, %v95
    %v112 = vsel %vm110, 1, 0
    %v113 = vsel %vm111, 1, 0
    %v114 = vcvt.s32.f32 %v112
    %v115 = vcvt.s32.f32 %v113
    %v116 = vpack.c.bf16 %v114, %v114
    %v117 = vpack.c.bf16 %v115, %v115
    %v120 = vunpack.c.l.b16 %v116
    %v121 = vunpack.c.l.b16 %v117
    %v122 = vpack.c.b16 %v121, %v120
    %v131 = vunpack.c.l.b16 %v85
    %v132 = vunpack.c.l.b16 %v86
    %v133 = vunpack.c.l.b16 %v87
    %v134 = vunpack.c.l.b16 %v88
    %v135 = vunpack.c.l.b16 %v89
    %v136 = vunpack.c.l.b16 %v90
    %v137 = vunpack.c.l.b16 %v91
    %v138 = vunpack.c.l.b16 %v92
    %v139 = vpack.c.b16 %v132, %v131
    %v140 = vpack.c.b16 %v134, %v133
    %v141 = vpack.c.b16 %v136, %v135
    %v142 = vpack.c.b16 %v138, %v137
    %vm147 = vcmask 523264
    %v149 = vsel %vm147, %v122, 0
    %151 = vmatprep.subr.bf16.mxu0 0
    %152 = vmatpush1.bf16.msra.mxu0 0
    %153 = vmatprep.subr.bf16.mxu0 0
    %154 = vmatpush1.bf16.msra.mxu0 0
    %155 = vmatprep.subr.bf16.mxu0 0
    %156 = vmatpush1.bf16.msra.mxu0 0
    %157 = vmatprep.subr.bf16.mxu0 0
    %158 = vmatpush1.bf16.msra.mxu0 0
    %159 = vmatprep.subr.bf16.mxu0 0
    %160 = vmatpush1.bf16.msra.mxu0 %v142
    %161 = vmatprep.subr.bf16.mxu0 0
    %162 = vmatpush1.bf16.msra.mxu0 %v141
    %163 = vmatprep.subr.bf16.mxu0 0
    %164 = vmatpush1.bf16.msra.mxu0 %v140
    %165 = vmatprep.subr.bf16.mxu0 0
    %166 = vmatpush1.bf16.msra.mxu0 %v139
    %167 = vmatprep.subr.bf16.mxu0 0
    %168 = vmatpush2.bf16.msra.mxu0 0
    %169 = vmatprep.subr.bf16.mxu0 0
    %170 = vmatpush2.bf16.msra.mxu0 0
    %171 = vmatprep.subr.bf16.mxu0 0
    %172 = vmatpush2.bf16.msra.mxu0 0
    %173 = vmatprep.subr.bf16.mxu0 0
    %174 = vmatpush2.bf16.msra.mxu0 0
    %175 = vmatprep.subr.bf16.mxu0 0
    %176 = vmatpush2.bf16.msra.mxu0 0
    %177 = vmatprep.subr.bf16.mxu0 0
    %178 = vmatpush2.bf16.msra.mxu0 0
    %179 = vmatprep.subr.bf16.mxu0 0
    %180 = vmatpush2.bf16.msra.mxu0 0
    %181 = vmatprep.subr.bf16.mxu0 0
    %182 = vmatpush2.bf16.msra.mxu0 0
    %183 = vmatprep.mubr.bf16.mxu0 0
    %184 = vmatmul.mubr.bf16.gmra.mxu0 %v149
    %v185 = vpop.f32.mrf.mxu0
    %v186 = vadd.f32 0.0, %v185
    %v187 = vpop.f32.mrf.mxu0
    %v188 = vpop.f32.mrf.mxu0
    %v189 = vadd.f32 0.0, %v188
    %v190 = vpop.f32.mrf.mxu0
    %191 = vdwg.mxu0
    %v192 = vadd.f32 %v186, %v93
    %v193 = vadd.f32 %v189, %v93
    %194 = vset.pattern.permute.xlu0 0
    %195 = vperm.xlu0 %194, %v82
    %v196 = vpop.permute.xlu0 %195
    %vm197 = vcmp.eq.s32.totalorder %v196, %v95
    %v198 = vsel %vm197, 1, 0
    %v199 = vcvt.s32.f32 %v198
    %v200 = vpack.c.bf16 %v199, %v199
    %v201 = vlaneseq
    %v202 = vshrl.u32 %v201, 7
    %v203 = vsub.s32 0, %v202
    %v204 = vrot.slane %v93, %v203
    %v206 = vsel %vm147, %v200, 0
    %208 = vmatprep.subr.bf16.mxu0 0
    %209 = vmatpush1.bf16.msra.mxu0 0
    %210 = vmatprep.subr.bf16.mxu0 0
    %211 = vmatpush1.bf16.msra.mxu0 0
    %212 = vmatprep.subr.bf16.mxu0 0
    %213 = vmatpush1.bf16.msra.mxu0 0
    %214 = vmatprep.subr.bf16.mxu0 0
    %215 = vmatpush1.bf16.msra.mxu0 0
    %216 = vmatprep.subr.bf16.mxu0 0
    %217 = vmatpush1.bf16.msra.mxu0 %v142
    %218 = vmatprep.subr.bf16.mxu0 0
    %219 = vmatpush1.bf16.msra.mxu0 %v141
    %220 = vmatprep.subr.bf16.mxu0 0
    %221 = vmatpush1.bf16.msra.mxu0 %v140
    %222 = vmatprep.subr.bf16.mxu0 0
    %223 = vmatpush1.bf16.msra.mxu0 %v139
    %224 = vmatprep.subr.bf16.mxu0 0
    %225 = vmatpush2.bf16.msra.mxu0 0
    %226 = vmatprep.subr.bf16.mxu0 0
    %227 = vmatpush2.bf16.msra.mxu0 0
    %228 = vmatprep.subr.bf16.mxu0 0
    %229 = vmatpush2.bf16.msra.mxu0 0
    %230 = vmatprep.subr.bf16.mxu0 0
    %231 = vmatpush2.bf16.msra.mxu0 0
    %232 = vmatprep.subr.bf16.mxu0 0
    %233 = vmatpush2.bf16.msra.mxu0 0
    %234 = vmatprep.subr.bf16.mxu0 0
    %235 = vmatpush2.bf16.msra.mxu0 0
    %236 = vmatprep.subr.bf16.mxu0 0
    %237 = vmatpush2.bf16.msra.mxu0 0
    %238 = vmatprep.subr.bf16.mxu0 0
    %239 = vmatpush2.bf16.msra.mxu0 0
    %240 = vmatprep.mubr.bf16.mxu0 0
    %241 = vmatmul.mubr.bf16.gmra.mxu0 %v206
    %v242 = vpop.f32.mrf.mxu0
    %v243 = vadd.f32 %v204, %v242
    %v244 = vpop.f32.mrf.mxu0
    %v245 = vpop.f32.mrf.mxu0
    %v246 = vpop.f32.mrf.mxu0
    %247 = vdwg.mxu0
    %v248 = vpack.c.bf16 %v193, %v192
    %v249 = vld [vmem:[%s5] sm:$0xf]
    %v250 = vld [vmem:[%s5 + $0x4] sm:$0xf]
    %v251 = vld [vmem:[%s5 + $0x8] sm:$0xf]
    %v252 = vld [vmem:[%s5 + $0xc] sm:$0xf]
    %v253 = vlaneseq
    %v254 = vshrl.u32 %v253, 7
    %v255 = vsub.s32 1, %v254
    %v256 = vrot.slane %v83, %v255
    %v261 = vunpack.c.l.b16 %v249
    %v262 = vunpack.c.l.b16 %v250
    %v263 = vunpack.c.l.b16 %v251
    %v264 = vunpack.c.l.b16 %v252
    %v265 = vpack.c.b16 %v262, %v261
    %v266 = vpack.c.b16 %v264, %v263
    %vm269 = vcmask 261120
    %v271 = vsel %vm269, %v248, 0
    %273 = vmatprep.subr.bf16.mxu0 0
    %274 = vmatpush1.bf16.msra.mxu0 0
    %275 = vmatprep.subr.bf16.mxu0 0
    %276 = vmatpush1.bf16.msra.mxu0 0
    %277 = vmatprep.subr.bf16.mxu0 0
    %278 = vmatpush1.bf16.msra.mxu0 0
    %279 = vmatprep.subr.bf16.mxu0 0
    %280 = vmatpush1.bf16.msra.mxu0 0
    %281 = vmatprep.subr.bf16.mxu0 0
    %282 = vmatpush1.bf16.msra.mxu0 0
    %283 = vmatprep.subr.bf16.mxu0 0
    %284 = vmatpush1.bf16.msra.mxu0 0
    %285 = vmatprep.subr.bf16.mxu0 0
    %286 = vmatpush1.bf16.msra.mxu0 %v266
    %287 = vmatprep.subr.bf16.mxu0 0
    %288 = vmatpush1.bf16.msra.mxu0 %v265
    %289 = vmatprep.subr.bf16.mxu0 0
    %290 = vmatpush2.bf16.msra.mxu0 0
    %291 = vmatprep.subr.bf16.mxu0 0
    %292 = vmatpush2.bf16.msra.mxu0 0
    %293 = vmatprep.subr.bf16.mxu0 0
    %294 = vmatpush2.bf16.msra.mxu0 0
    %295 = vmatprep.subr.bf16.mxu0 0
    %296 = vmatpush2.bf16.msra.mxu0 0
    %297 = vmatprep.subr.bf16.mxu0 0
    %298 = vmatpush2.bf16.msra.mxu0 0
    %299 = vmatprep.subr.bf16.mxu0 0
    %300 = vmatpush2.bf16.msra.mxu0 0
    %301 = vmatprep.subr.bf16.mxu0 0
    %302 = vmatpush2.bf16.msra.mxu0 0
    %303 = vmatprep.subr.bf16.mxu0 0
    %304 = vmatpush2.bf16.msra.mxu0 0
    %305 = vmatprep.mubr.bf16.mxu0 0
    %306 = vmatmul.mubr.bf16.gmra.mxu0 %v271
    %v307 = vpop.f32.mrf.mxu0
    %v308 = vadd.f32 %v256, %v307
    %v309 = vpop.f32.mrf.mxu0
    %v310 = vpop.f32.mrf.mxu0
    %v311 = vadd.f32 %v256, %v310
    %v312 = vpop.f32.mrf.mxu0
    %313 = vdwg.mxu0
    %v314 = vld [vmem:[%s6] sm:$0xf]
    %v315 = vld [vmem:[%s6 + $0x4] sm:$0xf]
    %v316 = vld [vmem:[%s6 + $0x8] sm:$0xf]
    %v317 = vld [vmem:[%s6 + $0xc] sm:$0xf]
    %v318 = vlaneseq
    %v319 = vshrl.u32 %v318, 7
    %v320 = vsub.s32 2, %v319
    %v321 = vrot.slane %v83, %v320
    %v326 = vunpack.c.l.b16 %v314
    %v327 = vunpack.c.l.b16 %v315
    %v328 = vunpack.c.l.b16 %v316
    %v329 = vunpack.c.l.b16 %v317
    %v330 = vpack.c.b16 %v327, %v326
    %v331 = vpack.c.b16 %v329, %v328
    %334 = vmatprep.subr.bf16.mxu0 0
    %335 = vmatpush1.bf16.msra.mxu0 0
    %336 = vmatprep.subr.bf16.mxu0 0
    %337 = vmatpush1.bf16.msra.mxu0 0
    %338 = vmatprep.subr.bf16.mxu0 0
    %339 = vmatpush1.bf16.msra.mxu0 0
    %340 = vmatprep.subr.bf16.mxu0 0
    %341 = vmatpush1.bf16.msra.mxu0 0
    %342 = vmatprep.subr.bf16.mxu0 0
    %343 = vmatpush1.bf16.msra.mxu0 0
    %344 = vmatprep.subr.bf16.mxu0 0
    %345 = vmatpush1.bf16.msra.mxu0 0
    %346 = vmatprep.subr.bf16.mxu0 0
    %347 = vmatpush1.bf16.msra.mxu0 %v331
    %348 = vmatprep.subr.bf16.mxu0 0
    %349 = vmatpush1.bf16.msra.mxu0 %v330
    %350 = vmatprep.subr.bf16.mxu0 0
    %351 = vmatpush2.bf16.msra.mxu0 0
    %352 = vmatprep.subr.bf16.mxu0 0
    %353 = vmatpush2.bf16.msra.mxu0 0
    %354 = vmatprep.subr.bf16.mxu0 0
    %355 = vmatpush2.bf16.msra.mxu0 0
    %356 = vmatprep.subr.bf16.mxu0 0
    %357 = vmatpush2.bf16.msra.mxu0 0
    %358 = vmatprep.subr.bf16.mxu0 0
    %359 = vmatpush2.bf16.msra.mxu0 0
    %360 = vmatprep.subr.bf16.mxu0 0
    %361 = vmatpush2.bf16.msra.mxu0 0
    %362 = vmatprep.subr.bf16.mxu0 0
    %363 = vmatpush2.bf16.msra.mxu0 0
    %364 = vmatprep.subr.bf16.mxu0 0
    %365 = vmatpush2.bf16.msra.mxu0 0
    %366 = vmatprep.mubr.bf16.mxu0 0
    %367 = vmatmul.mubr.bf16.gmra.mxu0 %v271
    %v368 = vpop.f32.mrf.mxu0
    %v369 = vadd.f32 %v321, %v368
    %v370 = vpop.f32.mrf.mxu0
    %v371 = vpop.f32.mrf.mxu0
    %v372 = vadd.f32 %v321, %v371
    %v373 = vpop.f32.mrf.mxu0
    %374 = vdwg.mxu0
    %v375 = vpack.c.bf16 %v243, %v243
    %v376 = vld [vmem:[%s4] sm:$0xf]
    %v377 = vld [vmem:[%s4 + $0x4] sm:$0xf]
    %v378 = vld [vmem:[%s4 + $0x8] sm:$0xf]
    %v379 = vld [vmem:[%s4 + $0xc] sm:$0xf]
    %v380 = vlaneseq
    %v381 = vshrl.u32 %v380, 7
    %v382 = vsub.s32 0, %v381
    %v383 = vrot.slane %v83, %v382
    %v388 = vunpack.c.l.b16 %v376
    %v389 = vunpack.c.l.b16 %v377
    %v390 = vunpack.c.l.b16 %v378
    %v391 = vunpack.c.l.b16 %v379
    %v392 = vpack.c.b16 %v389, %v388
    %v393 = vpack.c.b16 %v391, %v390
    %v397 = vsel %vm269, %v375, 0
    %399 = vmatprep.subr.bf16.mxu0 0
    %400 = vmatpush1.bf16.msra.mxu0 0
    %401 = vmatprep.subr.bf16.mxu0 0
    %402 = vmatpush1.bf16.msra.mxu0 0
    %403 = vmatprep.subr.bf16.mxu0 0
    %404 = vmatpush1.bf16.msra.mxu0 0
    %405 = vmatprep.subr.bf16.mxu0 0
    %406 = vmatpush1.bf16.msra.mxu0 0
    %407 = vmatprep.subr.bf16.mxu0 0
    %408 = vmatpush1.bf16.msra.mxu0 0
    %409 = vmatprep.subr.bf16.mxu0 0
    %410 = vmatpush1.bf16.msra.mxu0 0
    %411 = vmatprep.subr.bf16.mxu0 0
    %412 = vmatpush1.bf16.msra.mxu0 %v393
    %413 = vmatprep.subr.bf16.mxu0 0
    %414 = vmatpush1.bf16.msra.mxu0 %v392
    %415 = vmatprep.subr.bf16.mxu0 0
    %416 = vmatpush2.bf16.msra.mxu0 0
    %417 = vmatprep.subr.bf16.mxu0 0
    %418 = vmatpush2.bf16.msra.mxu0 0
    %419 = vmatprep.subr.bf16.mxu0 0
    %420 = vmatpush2.bf16.msra.mxu0 0
    %421 = vmatprep.subr.bf16.mxu0 0
    %422 = vmatpush2.bf16.msra.mxu0 0
    %423 = vmatprep.subr.bf16.mxu0 0
    %424 = vmatpush2.bf16.msra.mxu0 0
    %425 = vmatprep.subr.bf16.mxu0 0
    %426 = vmatpush2.bf16.msra.mxu0 0
    %427 = vmatprep.subr.bf16.mxu0 0
    %428 = vmatpush2.bf16.msra.mxu0 0
    %429 = vmatprep.subr.bf16.mxu0 0
    %430 = vmatpush2.bf16.msra.mxu0 0
    %431 = vmatprep.mubr.bf16.mxu0 0
    %432 = vmatmul.mubr.bf16.gmra.mxu0 %v397
    %v433 = vpop.f32.mrf.mxu0
    %v434 = vadd.f32 %v383, %v433
    %v435 = vpop.f32.mrf.mxu0
    %v436 = vpop.f32.mrf.mxu0
    %v437 = vpop.f32.mrf.mxu0
    %438 = vdwg.mxu0
    %v441 = vunpack.c.l.s4 1966171168
    %v442 = vunpack.c.0.s8 %v441
    %v443 = vlaneseq
    %v444 = vshrl.u32 %v443, 7
    %v445 = vsub.s32 %v442, %v444
    %v446 = vrot.slane %v434, %v445
    %v447 = vcombine.high %v446, %v446
    %v449 = vunpack.c.l.s4 1966171168
    %v450 = vunpack.c.0.s8 %v449
    %v451 = vlaneseq
    %v452 = vshrl.u32 %v451, 7
    %v453 = vsub.s32 %v450, %v452
    %v454 = vrot.slane %v446, %v453
    %v456 = vunpack.c.l.s4 1966171168
    %v457 = vunpack.c.0.s8 %v456
    %v458 = vlaneseq
    %v459 = vshrl.u32 %v458, 7
    %v460 = vsub.s32 %v457, %v459
    %v461 = vrot.slane %v447, %v460
    %v462 = vlaneseq
    %v463 = vshrl.u32 %v462, 7
    %v464 = vsub.s32 0, %v463
    %v465 = vrot.slane %v454, %v464
    %v466 = vlaneseq
    %v467 = vshrl.u32 %v466, 7
    %v468 = vsub.s32 0, %v467
    %v469 = vrot.slane %v461, %v468
    %v472 = vmul.f32 %v465, %v308
    %v473 = vmul.f32 %v469, %v311
    %v474 = vsel %vm269, %v472, 0.0
    %475 = vadd.xlane.f32.xlu0 %v474
    %v476 = vpop.xlane.xlu0 %475
    %v477 = vsel %vm269, %v473, 0.0
    %478 = vadd.xlane.f32.xlu0 %v477
    %v479 = vpop.xlane.xlu0 %478
    %v480 = vmul.f32 %v476, 0.17677669
    %v481 = vmul.f32 %v479, 0.17677669
    %v482 = vld [vmem:[#allocation5] sm:$0x3]
    %vm483 = vcmp.gt.s32.totalorder %v482, 0
    %v484 = vsel %vm483, 0.0, -1e+09
    %v486 = vlaneseq
    %v487 = vshrl.u32 %v486, 7
    %v488 = vsub.s32 0, %v487
    %v489 = vrot.slane %v484, %v488
    %491 = vbcast.lane.b32.xlu0 %v489, 256
    %v492 = vpop.permute.xlu0 %491
    %v493 = vlaneseq
    %v494 = vshrl.u32 %v493, 7
    %v495 = vsub.s32 1, %v494
    %v496 = vrot.slane %v484, %v495
    %498 = vbcast.lane.b32.xlu0 %v496, 256
    %v499 = vpop.permute.xlu0 %498
    %v502 = vadd.f32 %v480, %v492
    %v503 = vadd.f32 %v481, %v499
    %506 = vset.pattern.permute.xlu0 0
    %507 = vperm.xlu0 %506, %v502
    %v508 = vpop.permute.xlu0 %507
    %509 = vset.pattern.permute.xlu0 0
    %510 = vperm.xlu0 %509, %v503
    %v511 = vpop.permute.xlu0 %510
    %v512 = vlaneseq
    %v513 = vshrl.u32 %v512, 7
    %v514 = vsub.s32 %v95, %v513
    %v515 = vrot.slane %v508, %v514
    %v516 = vlaneseq
    %v517 = vshrl.u32 %v516, 7
    %v518 = vsub.s32 %v95, %v517
    %v519 = vrot.slane %v511, %v518
    %vm520 = vcmask 1041409
    %v521 = vsel %vm520, %v519, %v515
    %vm523 = vcmask 58368
    %v524 = vsel %vm523, %v521, -inf
    %525 = vmax.xlane.f32.xlu0 %v524
    %v526 = vpop.xlane.xlu0 %525
    %v528 = vlaneseq
    %v529 = vshrl.u32 %v528, 7
    %v530 = vsub.s32 0, %v529
    %v531 = vrot.slane %v526, %v530
    %v532 = vlaneseq
    %v533 = vshrl.u32 %v532, 7
    %v534 = vsub.s32 1, %v533
    %v535 = vrot.slane %v526, %v534
    %v538 = vsub.f32 %v502, %v531
    %v539 = vsub.f32 %v503, %v535
    %v540 = vmul.f32 %v538, 1.442695
    %v541 = vpow.pop %v540
    %v542 = vmul.f32 %v539, 1.442695
    %v543 = vpow.pop %v542
    %546 = vset.pattern.permute.xlu0 0
    %547 = vperm.xlu0 %546, %v541
    %v548 = vpop.permute.xlu0 %547
    %549 = vset.pattern.permute.xlu0 0
    %550 = vperm.xlu0 %549, %v543
    %v551 = vpop.permute.xlu0 %550
    %v552 = vlaneseq
    %v553 = vshrl.u32 %v552, 7
    %v554 = vsub.s32 %v95, %v553
    %v555 = vrot.slane %v548, %v554
    %v556 = vlaneseq
    %v557 = vshrl.u32 %v556, 7
    %v558 = vsub.s32 %v95, %v557
    %v559 = vrot.slane %v551, %v558
    %v560 = vsel %vm520, %v559, %v555
    %v562 = vsel %vm523, %v560, 0.0
    %563 = vadd.xlane.f32.xlu0 %v562
    %v564 = vpop.xlane.xlu0 %563
    %v565 = vrcp.pop %v564
    %v567 = vlaneseq
    %v568 = vshrl.u32 %v567, 7
    %v569 = vsub.s32 0, %v568
    %v570 = vrot.slane %v565, %v569
    %v571 = vlaneseq
    %v572 = vshrl.u32 %v571, 7
    %v573 = vsub.s32 1, %v572
    %v574 = vrot.slane %v565, %v573
    %v577 = vmul.f32 %v541, %v570
    %v578 = vmul.f32 %v543, %v574
    %580 = vset.pattern.permute.xlu0 0
    %581 = vperm.xlu0 %580, %v577
    %v582 = vpop.permute.xlu0 %581
    %585 = vset.pattern.permute.xlu0 0
    %586 = vperm.xlu0 %585, %v578
    %v587 = vpop.permute.xlu0 %586
    %v589 = vmul.f32 %v582, %v369
    %v590 = vmul.f32 %v587, %v372
    %v591 = vsel %vm269, %v589, 0.0
    %v592 = vrot.slane %v591, 4
    %v593 = vadd.f32 %v591, %v592
    %v594 = vrot.slane %v593, 2
    %v595 = vadd.f32 %v593, %v594
    %v596 = vrot.slane %v595, 1
    %v597 = vadd.f32 %v595, %v596
    %v598 = vsel %vm269, %v590, 0.0
    %v599 = vrot.slane %v598, 4
    %v600 = vadd.f32 %v598, %v599
    %v601 = vrot.slane %v600, 2
    %v602 = vadd.f32 %v600, %v601
    %v603 = vrot.slane %v602, 1
    %v604 = vadd.f32 %v602, %v603
    %v605 = vpack.c.bf16 %v597, %v597
    %v606 = vpack.c.bf16 %v604, %v604
    %v607 = vld [vmem:[%s7] sm:$0xf]
    %v608 = vld [vmem:[%s7 + $0x4] sm:$0xf]
    %v609 = vld [vmem:[%s7 + $0x8] sm:$0xf]
    %v610 = vld [vmem:[%s7 + $0xc] sm:$0xf]
    %v611 = vlaneseq
    %v612 = vshrl.u32 %v611, 7
    %v613 = vsub.s32 3, %v612
    %v614 = vrot.slane %v83, %v613
    %v617 = vunpack.c.l.b16 %v605
    %v618 = vunpack.c.l.b16 %v606
    %v619 = vsel %vm520, %v618, %v617
    %v620 = vpack.c.b16 %v619, %v619
    %v625 = vunpack.c.l.b16 %v607
    %v626 = vunpack.c.l.b16 %v608
    %v627 = vunpack.c.l.b16 %v609
    %v628 = vunpack.c.l.b16 %v610
    %v629 = vpack.c.b16 %v626, %v625
    %v630 = vpack.c.b16 %v628, %v627
    %v634 = vsel %vm269, %v620, 0
    %636 = vmatprep.subr.bf16.mxu0 0
    %637 = vmatpush1.bf16.msra.mxu0 0
    %638 = vmatprep.subr.bf16.mxu0 0
    %639 = vmatpush1.bf16.msra.mxu0 0
    %640 = vmatprep.subr.bf16.mxu0 0
    %641 = vmatpush1.bf16.msra.mxu0 0
    %642 = vmatprep.subr.bf16.mxu0 0
    %643 = vmatpush1.bf16.msra.mxu0 0
    %644 = vmatprep.subr.bf16.mxu0 0
    %645 = vmatpush1.bf16.msra.mxu0 0
    %646 = vmatprep.subr.bf16.mxu0 0
    %647 = vmatpush1.bf16.msra.mxu0 0
    %648 = vmatprep.subr.bf16.mxu0 0
    %649 = vmatpush1.bf16.msra.mxu0 %v630
    %650 = vmatprep.subr.bf16.mxu0 0
    %651 = vmatpush1.bf16.msra.mxu0 %v629
    %652 = vmatprep.subr.bf16.mxu0 0
    %653 = vmatpush2.bf16.msra.mxu0 0
    %654 = vmatprep.subr.bf16.mxu0 0
    %655 = vmatpush2.bf16.msra.mxu0 0
    %656 = vmatprep.subr.bf16.mxu0 0
    %657 = vmatpush2.bf16.msra.mxu0 0
    %658 = vmatprep.subr.bf16.mxu0 0
    %659 = vmatpush2.bf16.msra.mxu0 0
    %660 = vmatprep.subr.bf16.mxu0 0
    %661 = vmatpush2.bf16.msra.mxu0 0
    %662 = vmatprep.subr.bf16.mxu0 0
    %663 = vmatpush2.bf16.msra.mxu0 0
    %664 = vmatprep.subr.bf16.mxu0 0
    %665 = vmatpush2.bf16.msra.mxu0 0
    %666 = vmatprep.subr.bf16.mxu0 0
    %667 = vmatpush2.bf16.msra.mxu0 0
    %668 = vmatprep.mubr.bf16.mxu0 0
    %669 = vmatmul.mubr.bf16.gmra.mxu0 %v634
    %v670 = vpop.f32.mrf.mxu0
    %v671 = vadd.f32 %v614, %v670
    %v672 = vpop.f32.mrf.mxu0
    %v673 = vpop.f32.mrf.mxu0
    %v674 = vpop.f32.mrf.mxu0
    %675 = vdwg.mxu0
    %v676 = vadd.f32 %v243, %v671
    %vm677 = vcmask 254976
    %v678 = vsel %vm677, %v676, 0.0
    %679 = vadd.xlane.f32.xlu0 %v678
    %v680 = vpop.xlane.xlu0 %679
    %v681 = vrcp.pop 32.0
    %v682 = vmul.f32 %v680, %v681
    %v683 = vsub.f32 %v676, %v682
    %v684 = vmul.f32 %v683, %v683
    %v685 = vsel %vm677, %v684, 0.0
    %686 = vadd.xlane.f32.xlu0 %v685
    %v687 = vpop.xlane.xlu0 %686
    %v688 = vmul.f32 %v687, %v681
    %v689 = vadd.f32 %v688, 1e-05
    %v690 = vrsqrt.pop %v689
    %v691 = vmul.f32 %v683, %v690
    %v692 = vlaneseq
    %v693 = vshrl.u32 %v692, 7
    %v694 = vsub.s32 5, %v693
    %v695 = vrot.slane %v83, %v694
    %v696 = vmul.f32 %v691, %v695
    %v697 = vlaneseq
    %v698 = vshrl.u32 %v697, 7
    %v699 = vsub.s32 6, %v698
    %v700 = vrot.slane %v83, %v699
    %v701 = vadd.f32 %v696, %v700
    %v702 = vpack.c.bf16 %v701, %v701
    %v703 = vld [vmem:[%s8] sm:$0xf]
    %v704 = vld [vmem:[%s8 + $0x4] sm:$0xf]
    %v705 = vld [vmem:[%s8 + $0x8] sm:$0xf]
    %v706 = vld [vmem:[%s8 + $0xc] sm:$0xf]
    %v707 = vld [vmem:[%s9] sm:$0x1]
    %v709 = vlaneseq
    %v710 = vshrl.u32 %v709, 7
    %v711 = vsub.s32 0, %v710
    %v712 = vrot.slane %v707, %v711
    %v718 = vunpack.c.l.b16 %v703
    %v719 = vunpack.c.l.b16 %v704
    %v720 = vunpack.c.l.b16 %v705
    %v721 = vunpack.c.l.b16 %v706
    %v722 = vpack.c.b16 %v719, %v718
    %v723 = vpack.c.b16 %v721, %v720
    %v727 = vsel %vm269, %v702, 0
    %729 = vmatprep.subr.bf16.mxu0 0
    %730 = vmatpush1.bf16.msra.mxu0 0
    %731 = vmatprep.subr.bf16.mxu0 0
    %732 = vmatpush1.bf16.msra.mxu0 0
    %733 = vmatprep.subr.bf16.mxu0 0
    %734 = vmatpush1.bf16.msra.mxu0 0
    %735 = vmatprep.subr.bf16.mxu0 0
    %736 = vmatpush1.bf16.msra.mxu0 0
    %737 = vmatprep.subr.bf16.mxu0 0
    %738 = vmatpush1.bf16.msra.mxu0 0
    %739 = vmatprep.subr.bf16.mxu0 0
    %740 = vmatpush1.bf16.msra.mxu0 0
    %741 = vmatprep.subr.bf16.mxu0 0
    %742 = vmatpush1.bf16.msra.mxu0 %v723
    %743 = vmatprep.subr.bf16.mxu0 0
    %744 = vmatpush1.bf16.msra.mxu0 %v722
    %745 = vmatprep.subr.bf16.mxu0 0
    %746 = vmatpush2.bf16.msra.mxu0 0
    %747 = vmatprep.subr.bf16.mxu0 0
    %748 = vmatpush2.bf16.msra.mxu0 0
    %749 = vmatprep.subr.bf16.mxu0 0
    %750 = vmatpush2.bf16.msra.mxu0 0
    %751 = vmatprep.subr.bf16.mxu0 0
    %752 = vmatpush2.bf16.msra.mxu0 0
    %753 = vmatprep.subr.bf16.mxu0 0
    %754 = vmatpush2.bf16.msra.mxu0 0
    %755 = vmatprep.subr.bf16.mxu0 0
    %756 = vmatpush2.bf16.msra.mxu0 0
    %757 = vmatprep.subr.bf16.mxu0 0
    %758 = vmatpush2.bf16.msra.mxu0 0
    %759 = vmatprep.subr.bf16.mxu0 0
    %760 = vmatpush2.bf16.msra.mxu0 0
    %761 = vmatprep.mubr.bf16.mxu0 0
    %762 = vmatmul.mubr.bf16.gmra.mxu0 %v727
    %v763 = vpop.f32.mrf.mxu0
    %v764 = vadd.f32 %v712, %v763
    %v765 = vpop.f32.mrf.mxu0
    %v766 = vpop.f32.mrf.mxu0
    %v767 = vpop.f32.mrf.mxu0
    %768 = vdwg.mxu0
    %v769 = vmul.f32 %v764, 0.5
    %v770 = vmul.f32 %v764, 0.044715
    %v771 = vmul.f32 %v770, %v764
    %v772 = vmul.f32 %v771, %v764
    %v773 = vadd.f32 %v764, %v772
    %v774 = vmul.f32 %v773, 0.7978846
    %v775 = vtanh.pop %v774
    %v776 = vadd.f32 %v775, 1.0
    %v777 = vmul.f32 %v769, %v776
    %v778 = vpack.c.bf16 %v777, %v777
    %v779 = vld [vmem:[%s10] sm:$0xf]
    %v780 = vld [vmem:[%s10 + $0x4] sm:$0xf]
    %v781 = vld [vmem:[%s10 + $0x8] sm:$0xf]
    %v782 = vld [vmem:[%s10 + $0xc] sm:$0xf]
    %v783 = vld [vmem:[%s10 + $0x10] sm:$0xf]
    %v784 = vld [vmem:[%s10 + $0x14] sm:$0xf]
    %v785 = vld [vmem:[%s10 + $0x18] sm:$0xf]
    %v786 = vld [vmem:[%s10 + $0x1c] sm:$0xf]
    %v787 = vlaneseq
    %v788 = vshrl.u32 %v787, 7
    %v789 = vsub.s32 4, %v788
    %v790 = vrot.slane %v83, %v789
    %v799 = vunpack.c.l.b16 %v779
    %v800 = vunpack.c.l.b16 %v780
    %v801 = vunpack.c.l.b16 %v781
    %v802 = vunpack.c.l.b16 %v782
    %v803 = vunpack.c.l.b16 %v783
    %v804 = vunpack.c.l.b16 %v784
    %v805 = vunpack.c.l.b16 %v785
    %v806 = vunpack.c.l.b16 %v786
    %v807 = vpack.c.b16 %v800, %v799
    %v808 = vpack.c.b16 %v802, %v801
    %v809 = vpack.c.b16 %v804, %v803
    %v810 = vpack.c.b16 %v806, %v805
    %v816 = vsel %vm147, %v778, 0
    %818 = vmatprep.subr.bf16.mxu0 0
    %819 = vmatpush1.bf16.msra.mxu0 0
    %820 = vmatprep.subr.bf16.mxu0 0
    %821 = vmatpush1.bf16.msra.mxu0 0
    %822 = vmatprep.subr.bf16.mxu0 0
    %823 = vmatpush1.bf16.msra.mxu0 0
    %824 = vmatprep.subr.bf16.mxu0 0
    %825 = vmatpush1.bf16.msra.mxu0 0
    %826 = vmatprep.subr.bf16.mxu0 0
    %827 = vmatpush1.bf16.msra.mxu0 %v810
    %828 = vmatprep.subr.bf16.mxu0 0
    %829 = vmatpush1.bf16.msra.mxu0 %v809
    %830 = vmatprep.subr.bf16.mxu0 0
    %831 = vmatpush1.bf16.msra.mxu0 %v808
    %832 = vmatprep.subr.bf16.mxu0 0
    %833 = vmatpush1.bf16.msra.mxu0 %v807
    %834 = vmatprep.subr.bf16.mxu0 0
    %835 = vmatpush2.bf16.msra.mxu0 0
    %836 = vmatprep.subr.bf16.mxu0 0
    %837 = vmatpush2.bf16.msra.mxu0 0
    %838 = vmatprep.subr.bf16.mxu0 0
    %839 = vmatpush2.bf16.msra.mxu0 0
    %840 = vmatprep.subr.bf16.mxu0 0
    %841 = vmatpush2.bf16.msra.mxu0 0
    %842 = vmatprep.subr.bf16.mxu0 0
    %843 = vmatpush2.bf16.msra.mxu0 0
    %844 = vmatprep.subr.bf16.mxu0 0
    %845 = vmatpush2.bf16.msra.mxu0 0
    %846 = vmatprep.subr.bf16.mxu0 0
    %847 = vmatpush2.bf16.msra.mxu0 0
    %848 = vmatprep.subr.bf16.mxu0 0
    %849 = vmatpush2.bf16.msra.mxu0 0
    %850 = vmatprep.mubr.bf16.mxu0 0
    %851 = vmatmul.mubr.bf16.gmra.mxu0 %v816
    %v852 = vpop.f32.mrf.mxu0
    %v853 = vadd.f32 %v790, %v852
    %v854 = vpop.f32.mrf.mxu0
    %v855 = vpop.f32.mrf.mxu0
    %v856 = vpop.f32.mrf.mxu0
    %857 = vdwg.mxu0
    %v858 = vadd.f32 %v701, %v853
    %v859 = vsel %vm677, %v858, 0.0
    %860 = vadd.xlane.f32.xlu0 %v859
    %v861 = vpop.xlane.xlu0 %860
    %v862 = vmul.f32 %v861, %v681
    %v863 = vsub.f32 %v858, %v862
    %v864 = vmul.f32 %v863, %v863
    %v865 = vsel %vm677, %v864, 0.0
    %866 = vadd.xlane.f32.xlu0 %v865
    %v867 = vpop.xlane.xlu0 %866
    %v868 = vmul.f32 %v867, %v681
    %v869 = vadd.f32 %v868, 1e-05
    %v870 = vrsqrt.pop %v869
    %v871 = vmul.f32 %v863, %v870
    %v872 = vlaneseq
    %v873 = vshrl.u32 %v872, 7
    %v874 = vsub.s32 7, %v873
    %v875 = vrot.slane %v83, %v874
    %v876 = vmul.f32 %v871, %v875
    %v877 = vlaneseq
    %v878 = vshrl.u32 %v877, 7
    %v879 = vsub.s32 0, %v878
    %v880 = vrot.slane %v84, %v879
    %v881 = vadd.f32 %v876, %v880
    %v882 = vlaneseq
    %v883 = vshrl.u32 %v882, 7
    %v884 = vsub.s32 1, %v883
    %v885 = vrot.slane %v84, %v884
    %v886 = vmul.f32 %v881, %v885
    %v887 = vsel %vm677, %v886, 0.0
    %888 = vadd.xlane.f32.xlu0 %v887
    %v889 = vpop.xlane.xlu0 %888
    %v890 = vld [vmem:[#allocation2] sm:$0x1]
    %v892 = vlaneseq
    %v893 = vshrl.u32 %v892, 7
    %v894 = vsub.s32 0, %v893
    %v895 = vrot.slane %v890, %v894
    %v897 = vadd.f32 %v889, %v895
    %vm898 = vcmask 1024
    %899 = vst.msk [vmem:[%s13] sm:$0x3] %vm898, %v897
    // Predicated region
    $region66: #{tpu_custom_call.1} parent=1 // pred_check
      _
    $region67: #{tpu_custom_call.1} parent=1 // pred_check_branch
      %901 = sbr.rel (0) target = $region69
    $region68: #{tpu_custom_call.1} parent=1 // pred_region
      _
    $region69: #{tpu_custom_call.1} parent=1 // pred_fallthru
      _
    // Predicated region
    $region70: #{tpu_custom_call.1} parent=1 // pred_check
      _
    $region71: #{tpu_custom_call.1} parent=1 // pred_check_branch
      %903 = sbr.rel (0) target = $region73
    $region72: #{tpu_custom_call.1} parent=1 // pred_region
      _
    $region73: #{tpu_custom_call.1} parent=1 // pred_fallthru
      _
    %904 = vsyncpa [#allocation4], 1
    %905 = vsyncpa [#allocation6], 1

</llo_original>
